<compile_context>
chip_gen: v6e
topology: v6e:2x2x1
jax: 0.10.0
libtpu: 0.0.40
codegen_flags: <defaults>
</compile_context>

<pallas_src>
import jax
import jax.numpy as jnp
from jax.experimental import pallas as pl
from jax.experimental.pallas import tpu as pltpu


def _copy_kernel(x_ref, o_ref):
    o_ref[...] = x_ref[...]


def _lane_dense_layout(n):
    """Pick (rows, lanes) with lanes a multiple of 128, preferring wide lanes."""
    for lanes in (4096, 2048, 1024, 512, 256, 128):
        if n % lanes == 0:
            return n // lanes, lanes
    return None


def _sublane_multiple(dtype):
    itemsize = jnp.dtype(dtype).itemsize
    return {4: 8, 2: 16, 1: 32}.get(itemsize, 8)


@jax.jit
def identity_pallas(x):
    orig_shape = x.shape
    n = x.size
    if n == 0:
        return x

    layout = _lane_dense_layout(n)
    if layout is not None:
        # Lane-dense 2D view: last dim is a multiple of 128.
        x2d = x.reshape(layout)
    else:
        # numel not 128-aligned: keep the original last dim on lanes.
        x2d = x.reshape(-1, orig_shape[-1]) if x.ndim > 1 else x.reshape(1, -1)

    R, C = x2d.shape
    itemsize = jnp.dtype(x.dtype).itemsize
    sub = _sublane_multiple(x.dtype)
    total_bytes = R * C * itemsize

    if total_bytes <= (2 << 20) or R < sub:
        # Small (or sublane-short) input: one full-array block, no tiling.
        tr = R
        grid = (1,)
    else:
        # Row tile targeting ~2 MiB per buffer -> (in + out) double-buffered
        # is <= ~8 MiB: safe on v7x's 32 MiB scoped VMEM default, deep enough
        # to hit the HBM roofline on v5e/v6e/v7x for a mem-bound copy.
        target_rows = max(sub, ((2 << 20) // (C * itemsize)) // sub * sub)
        tr = max(sub, min(target_rows, (R // sub) * sub))
        grid = (pl.cdiv(R, tr),)

    out2d = pl.pallas_call(
        _copy_kernel,
        out_shape=jax.ShapeDtypeStruct((R, C), x2d.dtype),
        grid_spec=pl.GridSpec(
            grid=grid,
            in_specs=[pl.BlockSpec((tr, C), lambda i: (i, 0))],
            out_specs=pl.BlockSpec((tr, C), lambda i: (i, 0)),
        ),
        # Identity: reuse the input buffer for the output; XLA can elide the
        # HBM round trip entirely.
        input_output_aliases={0: 0},
        compiler_params=pltpu.CompilerParams(
            dimension_semantics=("parallel",),
        ),
    )(x2d)
    return out2d.reshape(orig_shape)


if __name__ == "__main__":
    key = jax.random.PRNGKey(0)
    x = jax.random.normal(key, (2, 4, 16, 16), dtype=jnp.float32)  # NCHW
    y = identity_pallas(x)
    jax.block_until_ready(y)
    assert y.shape == x.shape and y.dtype == x.dtype
    assert bool(jnp.all(y == x))
    print("KERNEL_OK")
</pallas_src>

<mosaic_0001>
module attributes {stable_mosaic.version = 11 : i64} {
  func.func @_copy_kernel(%arg0: i32, %arg1: memref<1x2048xf32, #tpu.memory_space<vmem>>, %arg2: memref<1x2048xf32, #tpu.memory_space<vmem>>) attributes {dimension_semantics = [#tpu.dimension_semantics<parallel>], iteration_bounds = array<i64: 1>, scalar_prefetch = 0 : i64, scratch_operands = 0 : i64, tpu.core_type = #tpu.core_type<tc>, window_params = [{transform_indices = @transform_0, window_bounds = array<i64: 1, 2048>}, {transform_indices = @transform_1, window_bounds = array<i64: 1, 2048>}]} {
    %c0 = arith.constant 0 : index
    %c0_0 = arith.constant 0 : index
    %0 = vector.load %arg1[%c0, %c0_0] : memref<1x2048xf32, #tpu.memory_space<vmem>>, vector<1x2048xf32>
    %c0_1 = arith.constant 0 : index
    %c0_2 = arith.constant 0 : index
    %1 = vector.load %arg2[%c0_1, %c0_2] : memref<1x2048xf32, #tpu.memory_space<vmem>>, vector<1x2048xf32>
    tpu.vector_store %arg2[%c0_1, %c0_2], %0 {strides = array<i32>} : memref<1x2048xf32, #tpu.memory_space<vmem>>, vector<1x2048xf32>,
    return
  }
  func.func @transform_0(%arg0: i32) -> (i32, i32) {
    %c0_i32 = arith.constant 0 : i32
    %c0_i32_0 = arith.constant 0 : i32
    return %arg0, %c0_i32 : i32, i32
  }
  func.func @transform_1(%arg0: i32) -> (i32, i32) {
    %c0_i32 = arith.constant 0 : i32
    %c0_i32_0 = arith.constant 0 : i32
    return %arg0, %c0_i32 : i32, i32
  }
}

</mosaic_0001>

<llo_original>
// kernel: identity_pallas.1
$region0: #{identity_pallas.1}
  #allocation0 [shape = 'u32[]', space=smem, size = 0x4, offset = 0x4, fixed_abs, tag = 'smem constant byte address 0x4 - core index']
  #allocation1 [shape = 'u32[144,128]{1,0:T(1,128)}', space=vmem, size = 0x12000, scoped, tag = 'internal scratch']
  %s0 = inlined_call_operand.vmem [shape: f32[1,2048], index: 0, kind: input, shape index: {}, may-alias: {0,1}]
  %s1 = inlined_call_operand.vmem [shape: f32[1,2048], index: 1, kind: output, shape index: {}, may-alias: {0,1}]
  %s2 = sld [smem:[#allocation0]]
  $region14: #{identity_pallas.1} parent=0
    _
  %s4 = ssub.s32 1, %s2
  %s5 = scalar_select 0, %s4, %s2
  // Predicated region
  $region2: #{identity_pallas.1} parent=0 // pred_check
    _
  $region3: #{identity_pallas.1} parent=0 // pred_check_branch
    %7 = sbr.rel (0) target = $region5
  $region4: #{identity_pallas.1} parent=0 // pred_region
    _
  $region5: #{identity_pallas.1} parent=0 // pred_fallthru
    _
  %v8 = vld [vmem:[%s0] sm:$0xff]
  %v9 = vld [vmem:[%s0 + $0x8] sm:$0xff]
  %10 = vst [vmem:[%s1] sm:$0xff] %v8
  %11 = vst [vmem:[%s1 + $0x8] sm:$0xff] %v9
  // Predicated region
  $region6: #{identity_pallas.1} parent=0 // pred_check
    _
  $region7: #{identity_pallas.1} parent=0 // pred_check_branch
    %13 = sbr.rel (0) target = $region9
  $region8: #{identity_pallas.1} parent=0 // pred_region
    _
  $region9: #{identity_pallas.1} parent=0 // pred_fallthru
    _
  // Predicated region
  $region10: #{identity_pallas.1} parent=0 // pred_check
    _
  $region11: #{identity_pallas.1} parent=0 // pred_check_branch
    %15 = sbr.rel (0) target = $region13
  $region12: #{identity_pallas.1} parent=0 // pred_region
    _
  $region13: #{identity_pallas.1} parent=0 // pred_fallthru
    _

</llo_original>
